<compile_context>
chip_gen: v7x
topology: tpu7x:2x2x1
jax: 0.10.0
libtpu: 0.0.40
codegen_flags: <defaults>
</compile_context>

<pallas_src>
import jax
import jax.numpy as jnp
from jax.experimental import pallas as pl
from jax.experimental.pallas import tpu as pltpu


def _round_up(x, m):
    return ((x + m - 1) // m) * m


def _pick_tile(dim, target, align):
    """`target` when the dim is large enough, else dim rounded up to `align`
    (so blocks always divide the padded array evenly and stay aligned)."""
    if dim >= target:
        return target
    return _round_up(dim, align)


def _vmem_capacity_bytes():
    """Per-chip VMEM (v5e/v6e 128 MiB, v7x 64 MiB); conservative fallback."""
    try:
        cap = getattr(pltpu.get_tpu_info(), "vmem_capacity_bytes", None)
        if cap:
            return int(cap)
    except Exception:
        pass
    return 64 * 1024 * 1024


def _vmem_usage_bytes(tm, tn, tk, *, k_axis, has_bias, in_bytes, out_bytes):
    """Double-buffered in/out tiles + (optional) f32 accumulator scratch."""
    usage = 2 * (tm * tk + tk * tn) * in_bytes + 2 * tm * tn * out_bytes
    if has_bias:
        usage += 2 * tn * 4
    if k_axis:
        usage += tm * tn * 4
    return usage


def _make_kernel(has_bias, k_axis):
    """Build the kernel variant at trace time (bias / K-reduction flags)."""
    if k_axis:
        if has_bias:
            def kernel(x_ref, w_ref, b_ref, o_ref, acc_ref):
                k = pl.program_id(2)

                @pl.when(k == 0)
                def _init():
                    acc_ref[...] = jnp.zeros_like(acc_ref)

                acc_ref[...] += jnp.dot(x_ref[...], w_ref[...],
                                        preferred_element_type=jnp.float32)

                @pl.when(k == pl.num_programs(2) - 1)
                def _finalize():
                    o_ref[...] = (acc_ref[...]
                                  + b_ref[...].astype(jnp.float32)
                                  ).astype(o_ref.dtype)
        else:
            def kernel(x_ref, w_ref, o_ref, acc_ref):
                k = pl.program_id(2)

                @pl.when(k == 0)
                def _init():
                    acc_ref[...] = jnp.zeros_like(acc_ref)

                acc_ref[...] += jnp.dot(x_ref[...], w_ref[...],
                                        preferred_element_type=jnp.float32)

                @pl.when(k == pl.num_programs(2) - 1)
                def _finalize():
                    o_ref[...] = acc_ref[...].astype(o_ref.dtype)
    else:
        if has_bias:
            def kernel(x_ref, w_ref, b_ref, o_ref):
                acc = jnp.dot(x_ref[...], w_ref[...],
                              preferred_element_type=jnp.float32)
                o_ref[...] = (acc + b_ref[...].astype(jnp.float32)
                              ).astype(o_ref.dtype)
        else:
            def kernel(x_ref, w_ref, o_ref):
                acc = jnp.dot(x_ref[...], w_ref[...],
                              preferred_element_type=jnp.float32)
                o_ref[...] = acc.astype(o_ref.dtype)
    return kernel


def adapted_linear(x, weight, linear_bias=None, adaption_bias=None,
                   adaption_scale=None, *, compute_dtype=jnp.bfloat16):
    """x: [B, S, in_feat]; weight: [out_feat, in_feat] (nn.Linear layout)."""
    B, S, K = x.shape
    N, Kw = weight.shape
    assert K == Kw
    M = B * S
    out_dtype = x.dtype

    # --- wrapper-side prep (one fused HBM pass each) -----------------------
    # Fold adaption_scale into the weight in f32, transpose to [K, N], cast
    # once to the compute dtype:  (x*s) @ W^T == x @ (W*s)^T.
    w_f32 = weight.astype(jnp.float32)
    if adaption_scale is not None:
        w_f32 = w_f32 * adaption_scale.astype(jnp.float32)[None, :]
    w_kn = w_f32.T.astype(compute_dtype)                       # [K, N]
    x2d = x.reshape(M, K).astype(compute_dtype)                # [M, K]

    has_bias = (linear_bias is not None) or (adaption_bias is not None)
    if has_bias:
        if linear_bias is None:
            total_bias = adaption_bias.astype(jnp.float32)
        elif adaption_bias is None:
            total_bias = linear_bias.astype(jnp.float32)
        else:
            total_bias = (linear_bias.astype(jnp.float32)
                          + adaption_bias.astype(jnp.float32))

    # --- tiling under a per-chip VMEM budget --------------------------------
    in_bytes = jnp.dtype(compute_dtype).itemsize
    out_bytes = jnp.dtype(out_dtype).itemsize
    vmem_cap = _vmem_capacity_bytes()
    budget = int(vmem_cap * 0.75)        # ~48 MiB on v7x, ~96 MiB on v5e/v6e

    tm = _pick_tile(M, 512, 8)
    tn = _pick_tile(N, 512, 128)
    k_aligned = _round_up(K, 128)

    # Prefer a single full-K strip per output tile (no K axis, no accumulator).
    if _vmem_usage_bytes(tm, tn, k_aligned, k_axis=False, has_bias=has_bias,
                         in_bytes=in_bytes, out_bytes=out_bytes) <= budget:
        tk, k_axis = k_aligned, False
    else:
        tk, k_axis = _pick_tile(K, 512, 128), True
        # Defensive shrink; rarely triggers with <=512 tiles.
        while tn > 128 and _vmem_usage_bytes(
                tm, tn, tk, k_axis=True, has_bias=has_bias,
                in_bytes=in_bytes, out_bytes=out_bytes) > budget:
            tn = max(128, (tn // 2 // 128) * 128)
        while tm > 8 and _vmem_usage_bytes(
                tm, tn, tk, k_axis=True, has_bias=has_bias,
                in_bytes=in_bytes, out_bytes=out_bytes) > budget:
            tm = max(8, (tm // 2 // 8) * 8)

    m_pad = _round_up(M, tm)
    n_pad = _round_up(N, tn)
    k_pad = _round_up(K, tk)

    # Zero-pad to exact tile multiples (zeros along K keep the matmul exact;
    # padded M/N rows/cols are sliced off at the end).
    if (m_pad, k_pad) != (M, K):
        x2d = jnp.pad(x2d, ((0, m_pad - M), (0, k_pad - K)))
    if (k_pad, n_pad) != (K, N):
        w_kn = jnp.pad(w_kn, ((0, k_pad - K), (0, n_pad - N)))
    if has_bias:
        bias2d = total_bias.reshape(1, N)
        if n_pad != N:
            bias2d = jnp.pad(bias2d, ((0, 0), (0, n_pad - N)))

    # --- grid / specs --------------------------------------------------------
    if k_axis:
        grid = (m_pad // tm, n_pad // tn, k_pad // tk)
        x_spec = pl.BlockSpec((tm, tk), lambda i, j, k: (i, k))
        w_spec = pl.BlockSpec((tk, tn), lambda i, j, k: (k, j))
        b_spec = pl.BlockSpec((1, tn), lambda i, j, k: (0, j))
        o_spec = pl.BlockSpec((tm, tn), lambda i, j, k: (i, j))
        scratch = [pltpu.VMEM((tm, tn), jnp.float32)]
        dims = ("parallel", "parallel", "arbitrary")
    else:
        grid = (m_pad // tm, n_pad // tn)
        x_spec = pl.BlockSpec((tm, k_pad), lambda i, j: (i, 0))
        w_spec = pl.BlockSpec((k_pad, tn), lambda i, j: (0, j))
        b_spec = pl.BlockSpec((1, tn), lambda i, j: (0, j))
        o_spec = pl.BlockSpec((tm, tn), lambda i, j: (i, j))
        scratch = []
        dims = ("parallel", "parallel")

    in_specs = [x_spec, w_spec] + ([b_spec] if has_bias else [])
    args = (x2d, w_kn) + ((bias2d,) if has_bias else ())

    # Advisory cost hint; bytes_accessed counts tiled re-reads.
    grid_m, grid_n = m_pad // tm, n_pad // tn
    bytes_accessed = (grid_n * m_pad * k_pad * in_bytes
                      + grid_m * k_pad * n_pad * in_bytes
                      + m_pad * n_pad * out_bytes
                      + (grid_m * n_pad * 4 if has_bias else 0))
    cost = pl.CostEstimate(flops=2 * M * N * K, transcendentals=0,
                           bytes_accessed=int(bytes_accessed))

    out = pl.pallas_call(
        _make_kernel(has_bias, k_axis),
        out_shape=jax.ShapeDtypeStruct((m_pad, n_pad), out_dtype),
        grid_spec=pltpu.PrefetchScalarGridSpec(
            num_scalar_prefetch=0,
            grid=grid,
            in_specs=in_specs,
            out_specs=o_spec,
            scratch_shapes=scratch,
        ),
        compiler_params=pltpu.CompilerParams(
            dimension_semantics=dims,
            vmem_limit_bytes=int(budget),
        ),
        cost_estimate=cost,
    )(*args)

    return out[:M, :N].reshape(B, S, N)


if __name__ == "__main__":
    # Small shapes consistent with the wrapped nn.Linear.
    batch, seq, in_feat, out_feat = 2, 8, 32, 64

    key = jax.random.PRNGKey(0)
    kx, kw, kb, ks, kab = jax.random.split(key, 5)

    x = jax.random.normal(kx, (batch, seq, in_feat), dtype=jnp.float32)

    # nn.Linear params (deterministic synthetic init, PyTorch-like uniform bound).
    bound = 1.0 / (in_feat ** 0.5)
    weight = jax.random.uniform(kw, (out_feat, in_feat), jnp.float32, -bound, bound)
    linear_bias = jax.random.uniform(kb, (out_feat,), jnp.float32, -bound, bound)

    # bf16 MXU datapath => use bf16-appropriate tolerances vs the f32 reference.
    tol = dict(atol=5e-2, rtol=5e-2)

    # Case 1: AdaptedLinear.__init__ values (adaption bias zeros, scale ones).
    adaption_bias = jnp.zeros((out_feat,), jnp.float32)
    adaption_scale = jnp.ones((in_feat,), jnp.float32)
    y = jax.block_until_ready(
        adapted_linear(x, weight, linear_bias, adaption_bias, adaption_scale))
    ref = (x * adaption_scale) @ weight.T + linear_bias + adaption_bias
    assert y.shape == (batch, seq, out_feat)
    assert jnp.allclose(y, ref, **tol), "mismatch (identity adapters)"

    # Case 2: non-trivial adaption scale/bias (exercises the scale-fold path).
    adaption_scale2 = jax.random.normal(ks, (in_feat,), jnp.float32)
    adaption_bias2 = jax.random.normal(kab, (out_feat,), jnp.float32)
    y2 = jax.block_until_ready(
        adapted_linear(x, weight, linear_bias, adaption_bias2, adaption_scale2))
    ref2 = (x * adaption_scale2) @ weight.T + linear_bias + adaption_bias2
    assert jnp.allclose(y2, ref2, **tol), "mismatch (trained adapters)"

    # Case 3: add_bias=False / add_scale=False and bias-less Linear
    # (exercises the no-bias kernel variant — no bias array built or DMA'd).
    y3 = jax.block_until_ready(adapted_linear(x, weight, None, None, None))
    ref3 = x @ weight.T
    assert jnp.allclose(y3, ref3, **tol), "mismatch (no adapters)"

    print("KERNEL_OK")
</pallas_src>

<mosaic_0001>
module attributes {stable_mosaic.version = 11 : i64} {
  func.func @kernel(%arg0: i32, %arg1: i32, %arg2: memref<16x128xbf16, #tpu.memory_space<vmem>>, %arg3: memref<128x128xbf16, #tpu.memory_space<vmem>>, %arg4: memref<1x128xf32, #tpu.memory_space<vmem>>, %arg5: memref<16x128xf32, #tpu.memory_space<vmem>>) attributes {dimension_semantics = [#tpu.dimension_semantics<parallel>, #tpu.dimension_semantics<parallel>], iteration_bounds = array<i64: 1, 1>, scalar_prefetch = 0 : i64, scratch_operands = 0 : i64, tpu.core_type = #tpu.core_type<tc>, window_params = [{transform_indices = @transform_0, window_bounds = array<i64: 16, 128>}, {transform_indices = @transform_1, window_bounds = array<i64: 128, 128>}, {transform_indices = @transform_2, window_bounds = array<i64: 1, 128>}, {transform_indices = @transform_3, window_bounds = array<i64: 16, 128>}]} {
    %c0 = arith.constant 0 : index
    %c0_0 = arith.constant 0 : index
    %0 = vector.load %arg2[%c0, %c0_0] : memref<16x128xbf16, #tpu.memory_space<vmem>>, vector<16x128xbf16>
    %c0_1 = arith.constant 0 : index
    %c0_2 = arith.constant 0 : index
    %1 = vector.load %arg3[%c0_1, %c0_2] : memref<128x128xbf16, #tpu.memory_space<vmem>>, vector<128x128xbf16>
    %cst = arith.constant dense<0.000000e+00> : vector<16x128xf32>
    %2 = tpu.matmul %0, %1, %cst {dimension_numbers = #tpu.dot_dimension_numbers<[1], [0], [0], [1], [0, 0, 1, 1], [], []>} : vector<16x128xbf16>, vector<128x128xbf16>, vector<16x128xf32> -> vector<16x128xf32>
    %c0_3 = arith.constant 0 : index
    %c0_4 = arith.constant 0 : index
    %3 = vector.load %arg4[%c0_3, %c0_4] : memref<1x128xf32, #tpu.memory_space<vmem>>, vector<1x128xf32>
    %4 = vector.broadcast %3 : vector<1x128xf32> to vector<16x128xf32>
    %5 = arith.addf %2, %4 : vector<16x128xf32>
    %c0_5 = arith.constant 0 : index
    %c0_6 = arith.constant 0 : index
    %6 = vector.load %arg5[%c0_5, %c0_6] : memref<16x128xf32, #tpu.memory_space<vmem>>, vector<16x128xf32>
    tpu.vector_store %arg5[%c0_5, %c0_6], %5 {strides = array<i32>} : memref<16x128xf32, #tpu.memory_space<vmem>>, vector<16x128xf32>,
    return
  }
  func.func @transform_0(%arg0: i32, %arg1: i32) -> (i32, i32) {
    %c0_i32 = arith.constant 0 : i32
    %c0_i32_0 = arith.constant 0 : i32
    return %arg0, %c0_i32 : i32, i32
  }
  func.func @transform_1(%arg0: i32, %arg1: i32) -> (i32, i32) {
    %c0_i32 = arith.constant 0 : i32
    %c0_i32_0 = arith.constant 0 : i32
    return %c0_i32, %arg1 : i32, i32
  }
  func.func @transform_2(%arg0: i32, %arg1: i32) -> (i32, i32) {
    %c0_i32 = arith.constant 0 : i32
    %c0_i32_0 = arith.constant 0 : i32
    return %c0_i32, %arg1 : i32, i32
  }
  func.func @transform_3(%arg0: i32, %arg1: i32) -> (i32, i32) {
    %c0_i32 = arith.constant 0 : i32
    return %arg0, %arg1 : i32, i32
  }
}

</mosaic_0001>

<llo_original>
// kernel: tpu_custom_call.1
$region0: #{tpu_custom_call.1}
  #allocation0 [shape = 'u32[]', space=smem, size = 0x4, offset = 0x4, fixed_abs, tag = 'smem constant byte address 0x4 - core index']
  #allocation1 [shape = 'u32[144,128]{1,0:T(1,128)}', space=vmem, size = 0x12000, scoped, tag = 'internal scratch']
  %s0 = inlined_call_operand.hbm [shape: bf16[16,128], index: 0, kind: input, shape index: {}]
  %s1 = inlined_call_operand.hbm [shape: bf16[128,128], index: 1, kind: input, shape index: {}]
  %s2 = inlined_call_operand.vmem [shape: f32[1,128], index: 2, kind: input, shape index: {}]
  %s3 = inlined_call_operand.hbm [shape: f32[16,128], index: 3, kind: output, shape index: {}]
  %s4 = sld [smem:[#allocation0]]
  $region30: #{tpu_custom_call.1} parent=0
    _
  %s6 = ssub.s32 1, %s4
  %s7 = scalar_select 0, %s6, %s4
  $region1: #{tpu_custom_call.1} parent=0
    #allocation2 [shape = 'u8[4096]{0}', space=vmem, size = 0x1000, scoped, tag = 'input window, operand 0, single buffered']
    #allocation3 [shape = 's32[1]{0}', space=sflag, size = 0x4, scoped, tag = 'scoped memory for tpu_custom_call.1']
    #allocation4 [shape = 's32[1]{0}', space=sflag, size = 0x4, scoped, tag = 'scoped memory for tpu_custom_call.1']
    #allocation5 [shape = 'u8[32768]{0}', space=vmem, size = 0x8000, scoped, tag = 'input window, operand 1, single buffered']
    #allocation6 [shape = 's32[1]{0}', space=sflag, size = 0x4, scoped, tag = 'scoped memory for tpu_custom_call.1']
    #allocation7 [shape = 'u8[8192]{0}', space=vmem, size = 0x2000, scoped, tag = 'output window, operand 0, single buffered']
    %8 = vsyncpa [#allocation3], 0
    %9 = vsyncpa [#allocation6], 0
    %10 = vsyncpa [#allocation4], 0
    // Predicated region
    $region2: #{tpu_custom_call.1} parent=1 // pred_check
      _
    $region3: #{tpu_custom_call.1} parent=1 // pred_check_branch
      %12 = sbr.rel (0) target = $region5
    $region4: #{tpu_custom_call.1} parent=1 // pred_region
      %s14 = ssub.s32 128, 128
      %15 = vsyncadd [#allocation3], %s14
      %s16 = sshll.u32 [#allocation2], 4
      %s17 = int_to_ptr.vmem [resolvable:$true] %s16
      %22 = dma.hbm_to_vmem [thread:$0]  %s0, 128, %s17, [#allocation3], 64, 64, 4
    $region5: #{tpu_custom_call.1} parent=1 // pred_fallthru
      _
    // Predicated region
    $region6: #{tpu_custom_call.1} parent=1 // pred_check
      _
    $region7: #{tpu_custom_call.1} parent=1 // pred_check_branch
      %24 = sbr.rel (0) target = $region9
    $region8: #{tpu_custom_call.1} parent=1 // pred_region
      %s26 = ssub.s32 1024, 1024
      %27 = vsyncadd [#allocation6], %s26
      %s28 = sshll.u32 [#allocation5], 4
      %s29 = int_to_ptr.vmem [resolvable:$true] %s28
      %34 = dma.hbm_to_vmem [thread:$0]  %s1, 1024, %s29, [#allocation6], 64, 64, 4
    $region9: #{tpu_custom_call.1} parent=1 // pred_fallthru
      _
    // Predicated region
    $region10: #{tpu_custom_call.1} parent=1 // pred_check
      _
    $region11: #{tpu_custom_call.1} parent=1 // pred_check_branch
      %36 = sbr.rel (0) target = $region13
    $region12: #{tpu_custom_call.1} parent=1 // pred_region
      _
    $region13: #{tpu_custom_call.1} parent=1 // pred_fallthru
      _
    // Predicated region
    $region14: #{tpu_custom_call.1} parent=1 // pred_check
      _
    $region15: #{tpu_custom_call.1} parent=1 // pred_check_branch
      %38 = sbr.rel (0) target = $region17
    $region16: #{tpu_custom_call.1} parent=1 // pred_region
      %39 = dma.done [#allocation3], 128
    $region17: #{tpu_custom_call.1} parent=1 // pred_fallthru
      _
    // Predicated region
    $region18: #{tpu_custom_call.1} parent=1 // pred_check
      _
    $region19: #{tpu_custom_call.1} parent=1 // pred_check_branch
      %41 = sbr.rel (0) target = $region21
    $region20: #{tpu_custom_call.1} parent=1 // pred_region
      %42 = dma.done [#allocation6], 1024
    $region21: #{tpu_custom_call.1} parent=1 // pred_fallthru
      _
    %v44 = vld [vmem:[#allocation2] sm:$0xf]
    %v45 = vld [vmem:[#allocation2 + $0x4] sm:$0xf]
    %v46 = vld [vmem:[#allocation5] sm:$0xf]
    %v47 = vld [vmem:[#allocation5 + $0x4] sm:$0xf]
    %v48 = vld [vmem:[#allocation5 + $0x8] sm:$0xf]
    %v49 = vld [vmem:[#allocation5 + $0xc] sm:$0xf]
    %v50 = vld [vmem:[#allocation5 + $0x10] sm:$0xf]
    %v51 = vld [vmem:[#allocation5 + $0x14] sm:$0xf]
    %v52 = vld [vmem:[#allocation5 + $0x18] sm:$0xf]
    %v53 = vld [vmem:[#allocation5 + $0x1c] sm:$0xf]
    %v54 = vld [vmem:[#allocation5 + $0x20] sm:$0xf]
    %v55 = vld [vmem:[#allocation5 + $0x24] sm:$0xf]
    %v56 = vld [vmem:[#allocation5 + $0x28] sm:$0xf]
    %v57 = vld [vmem:[#allocation5 + $0x2c] sm:$0xf]
    %v58 = vld [vmem:[#allocation5 + $0x30] sm:$0xf]
    %v59 = vld [vmem:[#allocation5 + $0x34] sm:$0xf]
    %v60 = vld [vmem:[#allocation5 + $0x38] sm:$0xf]
    %v61 = vld [vmem:[#allocation5 + $0x3c] sm:$0xf]
    %v62 = vld [vmem:[%s2] sm:$0x1]
    %v64 = vlaneseq
    %v65 = vshrl.u32 %v64, 7
    %v66 = vsub.s32 0, %v65
    %v67 = vrot.slane %v62, %v66
    %v71 = vunpack.c.l.b16 %v44
    %v72 = vunpack.c.l.b16 %v45
    %v73 = vpack.c.b16 %v72, %v71
    %v91 = vunpack.c.l.b16 %v46
    %v92 = vunpack.c.l.b16 %v47
    %v93 = vunpack.c.l.b16 %v48
    %v94 = vunpack.c.l.b16 %v49
    %v95 = vunpack.c.l.b16 %v50
    %v96 = vunpack.c.l.b16 %v51
    %v97 = vunpack.c.l.b16 %v52
    %v98 = vunpack.c.l.b16 %v53
    %v99 = vunpack.c.l.b16 %v54
    %v100 = vunpack.c.l.b16 %v55
    %v101 = vunpack.c.l.b16 %v56
    %v102 = vunpack.c.l.b16 %v57
    %v103 = vunpack.c.l.b16 %v58
    %v104 = vunpack.c.l.b16 %v59
    %v105 = vunpack.c.l.b16 %v60
    %v106 = vunpack.c.l.b16 %v61
    %v107 = vpack.c.b16 %v92, %v91
    %v108 = vpack.c.b16 %v94, %v93
    %v109 = vpack.c.b16 %v96, %v95
    %v110 = vpack.c.b16 %v98, %v97
    %v111 = vpack.c.b16 %v100, %v99
    %v112 = vpack.c.b16 %v102, %v101
    %v113 = vpack.c.b16 %v104, %v103
    %v114 = vpack.c.b16 %v106, %v105
    %123 = vmatprep.subr.bf16.mxu0 0
    %124 = vmatpush1.bf16.msra.mxu0 %v107
    %125 = vmatprep.subr.bf16.mxu0 0
    %126 = vmatpush1.bf16.msra.mxu0 %v108
    %127 = vmatprep.subr.bf16.mxu0 0
    %128 = vmatpush1.bf16.msra.mxu0 %v109
    %129 = vmatprep.subr.bf16.mxu0 0
    %130 = vmatpush1.bf16.msra.mxu0 %v110
    %131 = vmatprep.subr.bf16.mxu0 0
    %132 = vmatpush1.bf16.msra.mxu0 %v111
    %133 = vmatprep.subr.bf16.mxu0 0
    %134 = vmatpush1.bf16.msra.mxu0 %v112
    %135 = vmatprep.subr.bf16.mxu0 0
    %136 = vmatpush1.bf16.msra.mxu0 %v113
    %137 = vmatprep.subr.bf16.mxu0 0
    %138 = vmatpush1.bf16.msra.mxu0 %v114
    %139 = vmatprep.subr.bf16.mxu0 0
    %140 = vmatpush1.bf16.msra.mxu0 0
    %141 = vmatprep.subr.bf16.mxu0 0
    %142 = vmatpush1.bf16.msra.mxu0 0
    %143 = vmatprep.subr.bf16.mxu0 0
    %144 = vmatpush1.bf16.msra.mxu0 0
    %145 = vmatprep.subr.bf16.mxu0 0
    %146 = vmatpush1.bf16.msra.mxu0 0
    %147 = vmatprep.subr.bf16.mxu0 0
    %148 = vmatpush1.bf16.msra.mxu0 0
    %149 = vmatprep.subr.bf16.mxu0 0
    %150 = vmatpush1.bf16.msra.mxu0 0
    %151 = vmatprep.subr.bf16.mxu0 0
    %152 = vmatpush1.bf16.msra.mxu0 0
    %153 = vmatprep.subr.bf16.mxu0 0
    %154 = vmatpush1.bf16.msra.mxu0 0
    %155 = vmatprep.mubr.bf16.mxu0 0
    %156 = vmatmul.mubr.bf16.gmra.mrb[0].mxu0 %v73
    %v157 = vpop.f32.mrb[0].mxu0
    %v158 = vadd.f32 %v67, %v157
    %v159 = vpop.f32.mrb[0].mxu0
    %v160 = vpop.f32.mrb[0].mxu0
    %v161 = vadd.f32 %v67, %v160
    %v162 = vpop.f32.mrb[0].mxu0
    %163 = vdwg.mxu0
    %164 = vst [vmem:[#allocation7] sm:$0xff] %v158
    %165 = vst [vmem:[#allocation7 + $0x8] sm:$0xff] %v161
    // Predicated region
    $region22: #{tpu_custom_call.1} parent=1 // pred_check
      _
    $region23: #{tpu_custom_call.1} parent=1 // pred_check_branch
      %167 = sbr.rel (0) target = $region25
    $region24: #{tpu_custom_call.1} parent=1 // pred_region
      %s169 = ssub.s32 256, 256
      %170 = vsyncadd [#allocation4], %s169
      %s171 = sshll.u32 [#allocation7], 4
      %s172 = int_to_ptr.vmem [resolvable:$true] %s171
      %177 = dma.vmem_to_hbm [thread:$0]  %s172, 256, %s3, [#allocation4], 128, 128, 8
    $region25: #{tpu_custom_call.1} parent=1 // pred_fallthru
      _
    // Predicated region
    $region26: #{tpu_custom_call.1} parent=1 // pred_check
      _
    $region27: #{tpu_custom_call.1} parent=1 // pred_check_branch
      %179 = sbr.rel (0) target = $region29
    $region28: #{tpu_custom_call.1} parent=1 // pred_region
      %180 = dma.done [#allocation4], 256
    $region29: #{tpu_custom_call.1} parent=1 // pred_fallthru
      _
    %181 = vsyncpa [#allocation3], 1
    %182 = vsyncpa [#allocation6], 1
    %183 = vsyncpa [#allocation4], 1

</llo_original>
